<compile_context>
chip_gen: v7x
topology: tpu7x:2x2x1
jax: 0.10.0
libtpu: 0.0.40
codegen_flags: <defaults>
</compile_context>

<pallas_src>
import math
import functools

import jax
import jax.numpy as jnp
from jax.experimental import pallas as pl
from jax.experimental.pallas import tpu as pltpu


# ----------------------------------------------------------------------------
# Pallas kernel: one MXU matmul per row tile against the DFT basis
# ----------------------------------------------------------------------------
def rfft_kernel(x_ref, dft_ref, out_ref):
    # x_ref:   (tile, N)   float32
    # dft_ref: (N, C)      float32   (cols [0,K)=cos, [K,2K)=-sin, [2K,C)=0)
    # out_ref: (tile, C)   float32   (real ‖ imag ‖ padding)
    out_ref[...] = jnp.dot(
        x_ref[...], dft_ref[...], preferred_element_type=jnp.float32
    ).astype(out_ref.dtype)


def _build_rfft_basis(n, cols):
    """Real DFT basis [N, cols]: first K cols give Re(X), next K give Im(X),
    remaining cols are zero padding (lane alignment only)."""
    k_out = n // 2 + 1
    nn = jnp.arange(n, dtype=jnp.float32)[:, None]
    kk = jnp.arange(k_out, dtype=jnp.float32)[None, :]
    theta = (2.0 * math.pi / n) * nn * kk
    basis = jnp.concatenate([jnp.cos(theta), -jnp.sin(theta)], axis=1)  # [N, 2K]
    if cols > 2 * k_out:
        basis = jnp.pad(basis, ((0, 0), (0, cols - 2 * k_out)))
    return basis


@functools.partial(jax.jit, static_argnames=("tile",))
def fourier_decomp(x, *, tile=512):
    """x: real array [..., N].  Returns complex64 rfft along the last axis,
    shape [..., N//2 + 1] (matches torch.fft.rfft(x, dim=-1))."""
    orig_shape = x.shape
    n = orig_shape[-1]
    k_out = n // 2 + 1
    m = math.prod(orig_shape[:-1]) if len(orig_shape) > 1 else 1

    x2d = x.reshape(m, n).astype(jnp.float32)

    # Lane-dense output width: (real ‖ imag) padded up to a multiple of 128.
    cols = pl.cdiv(2 * k_out, 128) * 128
    dft = _build_rfft_basis(n, cols)                   # [N, cols] float32

    # Row tile: as large as requested, clamped to the (8-aligned) problem size.
    tile = max(8, min(int(tile), pl.cdiv(m, 8) * 8))
    m_pad = pl.cdiv(m, tile) * tile
    if m_pad != m:
        x2d = jnp.pad(x2d, ((0, m_pad - m), (0, 0)))   # extra rows -> garbage, sliced off

    out2d = pl.pallas_call(
        rfft_kernel,
        out_shape=jax.ShapeDtypeStruct((m_pad, cols), jnp.float32),
        grid=(m_pad // tile,),
        in_specs=[
            pl.BlockSpec((tile, n), lambda i: (i, 0)),
            pl.BlockSpec((n, cols), lambda i: (0, 0)),
        ],
        out_specs=pl.BlockSpec((tile, cols), lambda i: (i, 0)),
        compiler_params=pltpu.CompilerParams(
            dimension_semantics=("parallel",),
        ),
    )(x2d, dft)

    real = out2d[:m, :k_out]
    imag = out2d[:m, k_out:2 * k_out]
    x_ft = jax.lax.complex(real, imag)
    return x_ft.reshape(orig_shape[:-1] + (k_out,))


# ----------------------------------------------------------------------------
# Main
# ----------------------------------------------------------------------------
if __name__ == "__main__":
    B, L, N = 2, 8, 32          # small shapes: batch=2, seq=8, hidden=32

    key = jax.random.PRNGKey(0)
    x = jax.random.normal(key, (B, L, N), dtype=jnp.float32)

    out = fourier_decomp(x)
    out = jax.block_until_ready(out)

    # Pure-JAX reference.
    ref = jnp.fft.rfft(x, axis=-1)

    assert out.shape == (B, L, N // 2 + 1), out.shape
    assert jnp.issubdtype(out.dtype, jnp.complexfloating), out.dtype
    assert jnp.allclose(out, ref, atol=2e-3, rtol=2e-3), "mismatch vs jnp.fft.rfft"

    print("KERNEL_OK")
</pallas_src>

<mosaic_0001>
module attributes {stable_mosaic.version = 11 : i64} {
  func.func @rfft_kernel(%arg0: i32, %arg1: memref<16x32xf32, #tpu.memory_space<vmem>>, %arg2: memref<32x128xf32, #tpu.memory_space<vmem>>, %arg3: memref<16x128xf32, #tpu.memory_space<vmem>>) attributes {dimension_semantics = [#tpu.dimension_semantics<parallel>], iteration_bounds = array<i64: 1>, scalar_prefetch = 0 : i64, scratch_operands = 0 : i64, tpu.core_type = #tpu.core_type<tc>, window_params = [{transform_indices = @transform_0, window_bounds = array<i64: 16, 32>}, {pipeline_mode = #tpu.pipeline_mode<synchronous>, transform_indices = @transform_1, window_bounds = array<i64: 32, 128>}, {transform_indices = @transform_2, window_bounds = array<i64: 16, 128>}]} {
    %c0 = arith.constant 0 : index
    %c0_0 = arith.constant 0 : index
    %0 = vector.load %arg1[%c0, %c0_0] : memref<16x32xf32, #tpu.memory_space<vmem>>, vector<16x32xf32>
    %c0_1 = arith.constant 0 : index
    %c0_2 = arith.constant 0 : index
    %1 = vector.load %arg2[%c0_1, %c0_2] : memref<32x128xf32, #tpu.memory_space<vmem>>, vector<32x128xf32>
    %cst = arith.constant dense<0.000000e+00> : vector<16x128xf32>
    %2 = tpu.matmul %0, %1, %cst {dimension_numbers = #tpu.dot_dimension_numbers<[1], [0], [0], [1], [0, 0, 1, 1], [], []>} : vector<16x32xf32>, vector<32x128xf32>, vector<16x128xf32> -> vector<16x128xf32>
    %c0_3 = arith.constant 0 : index
    %c0_4 = arith.constant 0 : index
    %3 = vector.load %arg3[%c0_3, %c0_4] : memref<16x128xf32, #tpu.memory_space<vmem>>, vector<16x128xf32>
    tpu.vector_store %arg3[%c0_3, %c0_4], %2 {strides = array<i32>} : memref<16x128xf32, #tpu.memory_space<vmem>>, vector<16x128xf32>,
    return
  }
  func.func @transform_0(%arg0: i32) -> (i32, i32) {
    %c0_i32 = arith.constant 0 : i32
    %c0_i32_0 = arith.constant 0 : i32
    return %arg0, %c0_i32 : i32, i32
  }
  func.func @transform_1(%arg0: i32) -> (i32, i32) {
    %c0_i32 = arith.constant 0 : i32
    %c0_i32_0 = arith.constant 0 : i32
    %c0_i32_1 = arith.constant 0 : i32
    return %c0_i32, %c0_i32_0 : i32, i32
  }
  func.func @transform_2(%arg0: i32) -> (i32, i32) {
    %c0_i32 = arith.constant 0 : i32
    %c0_i32_0 = arith.constant 0 : i32
    return %arg0, %c0_i32 : i32, i32
  }
}

</mosaic_0001>

<llo_original>
// kernel: custom-call
$region0: #{custom-call}
  %s0 = inlined_call_operand.vmem [shape: f32[2,8,17], index: 0, kind: input, shape index: {}]
  %s1 = inlined_call_operand.vmem [shape: f32[2,8,17], index: 1, kind: input, shape index: {}]
  %s2 = inlined_call_operand.hbm [shape: c64[2,8,17], index: 2, kind: output, shape index: {}]
  %s3 = scalar_lea.hbm %s2, 256
  $region1: #{custom-call} parent=0
    #allocation0 [shape = 's32[1]{0}', space=sflag, size = 0x4, scoped, tag = 'scoped memory for custom-call']
    %4 = vsyncpa [#allocation0], 0
    %s5 = sshll.u32 %s0, 4
    %s6 = int_to_ptr.vmem [resolvable:$true] %s5
    %8 = dma.vmem_to_hbm [thread:$0]  %s6, 256, %s2, [#allocation0]
    %9 = dma.done [#allocation0], 256
    %10 = vsyncpa [#allocation0], 1
  $region2: #{custom-call} parent=0
    #allocation1 [shape = 's32[1]{0}', space=sflag, size = 0x4, scoped, tag = 'scoped memory for custom-call']
    %11 = vsyncpa [#allocation1], 0
    %s12 = sshll.u32 %s1, 4
    %s13 = int_to_ptr.vmem [resolvable:$true] %s12
    %15 = dma.vmem_to_hbm [thread:$0]  %s13, 256, %s3, [#allocation1]
    %16 = dma.done [#allocation1], 256
    %17 = vsyncpa [#allocation1], 1

// kernel: fourier_decomp.1
$region0: #{fourier_decomp.1}
  #allocation0 [shape = 'u32[]', space=smem, size = 0x4, offset = 0x4, fixed_abs, tag = 'smem constant byte address 0x4 - core index']
  #allocation1 [shape = 'u32[144,128]{1,0:T(1,128)}', space=vmem, size = 0x12000, scoped, tag = 'internal scratch']
  %s0 = inlined_call_operand.vmem [shape: f32[16,32], index: 0, kind: input, shape index: {}]
  %s1 = inlined_call_operand.vmem [shape: f32[32,128], index: 1, kind: input, shape index: {}]
  %s2 = inlined_call_operand.vmem [shape: f32[16,128], index: 2, kind: output, shape index: {}]
  %s3 = sld [smem:[#allocation0]]
  $region18: #{fourier_decomp.1} parent=0
    _
  %s5 = ssub.s32 1, %s3
  %s6 = scalar_select 0, %s5, %s3
  // Predicated region
  $region2: #{fourier_decomp.1} parent=0 // pred_check
    _
  $region3: #{fourier_decomp.1} parent=0 // pred_check_branch
    %8 = sbr.rel (0) target = $region5
  $region4: #{fourier_decomp.1} parent=0 // pred_region
    _
  $region5: #{fourier_decomp.1} parent=0 // pred_fallthru
    _
  // Predicated region
  $region6: #{fourier_decomp.1} parent=0 // pred_check
    _
  $region7: #{fourier_decomp.1} parent=0 // pred_check_branch
    %10 = sbr.rel (0) target = $region9
  $region8: #{fourier_decomp.1} parent=0 // pred_region
    _
  $region9: #{fourier_decomp.1} parent=0 // pred_fallthru
    _
  %v11 = vld [vmem:[%s0] sm:$0xff]
  %v12 = vld [vmem:[%s0 + $0x8] sm:$0xff]
  %v13 = vld [vmem:[%s1] sm:$0xff]
  %v14 = vld [vmem:[%s1 + $0x8] sm:$0xff]
  %v15 = vld [vmem:[%s1 + $0x10] sm:$0xff]
  %v16 = vld [vmem:[%s1 + $0x18] sm:$0xff]
  %vm17 = vcmask 261120
  %v19 = vsel %vm17, %v11, 0
  %v22 = vsel %vm17, %v12, 0
  %24 = vmatprep.subr.mxu0 0.0
  %25 = vmatpush1.msra.mxu0 %v13
  %26 = vmatprep.subr.mxu0 0.0
  %27 = vmatpush1.msra.mxu0 %v14
  %28 = vmatprep.subr.mxu0 0.0
  %29 = vmatpush1.msra.mxu0 %v15
  %30 = vmatprep.subr.mxu0 0.0
  %31 = vmatpush1.msra.mxu0 %v16
  %32 = vmatprep.subr.mxu0 0.0
  %33 = vmatpush1.msra.mxu0 0.0
  %34 = vmatprep.subr.mxu0 0.0
  %35 = vmatpush1.msra.mxu0 0.0
  %36 = vmatprep.subr.mxu0 0.0
  %37 = vmatpush1.msra.mxu0 0.0
  %38 = vmatprep.subr.mxu0 0.0
  %39 = vmatpush1.msra.mxu0 0.0
  %40 = vmatprep.subr.mxu0 0.0
  %41 = vmatpush1.msra.mxu0 0.0
  %42 = vmatprep.subr.mxu0 0.0
  %43 = vmatpush1.msra.mxu0 0.0
  %44 = vmatprep.subr.mxu0 0.0
  %45 = vmatpush1.msra.mxu0 0.0
  %46 = vmatprep.subr.mxu0 0.0
  %47 = vmatpush1.msra.mxu0 0.0
  %48 = vmatprep.subr.mxu0 0.0
  %49 = vmatpush1.msra.mxu0 0.0
  %50 = vmatprep.subr.mxu0 0.0
  %51 = vmatpush1.msra.mxu0 0.0
  %52 = vmatprep.subr.mxu0 0.0
  %53 = vmatpush1.msra.mxu0 0.0
  %54 = vmatprep.subr.mxu0 0.0
  %55 = vmatpush1.msra.mxu0 0.0
  %56 = vmatprep.subr.mxu0 0.0
  %57 = vmatpush1.msra.mxu0 0.0
  %58 = vmatprep.subr.mxu0 0.0
  %59 = vmatpush1.msra.mxu0 0.0
  %60 = vmatprep.subr.mxu0 0.0
  %61 = vmatpush1.msra.mxu0 0.0
  %62 = vmatprep.subr.mxu0 0.0
  %63 = vmatpush1.msra.mxu0 0.0
  %64 = vmatprep.subr.mxu0 0.0
  %65 = vmatpush1.msra.mxu0 0.0
  %66 = vmatprep.subr.mxu0 0.0
  %67 = vmatpush1.msra.mxu0 0.0
  %68 = vmatprep.subr.mxu0 0.0
  %69 = vmatpush1.msra.mxu0 0.0
  %70 = vmatprep.subr.mxu0 0.0
  %71 = vmatpush1.msra.mxu0 0.0
  %72 = vmatprep.subr.mxu0 0.0
  %73 = vmatpush1.msra.mxu0 0.0
  %74 = vmatprep.subr.mxu0 0.0
  %75 = vmatpush1.msra.mxu0 0.0
  %76 = vmatprep.subr.mxu0 0.0
  %77 = vmatpush1.msra.mxu0 0.0
  %78 = vmatprep.subr.mxu0 0.0
  %79 = vmatpush1.msra.mxu0 0.0
  %80 = vmatprep.subr.mxu0 0.0
  %81 = vmatpush1.msra.mxu0 0.0
  %82 = vmatprep.subr.mxu0 0.0
  %83 = vmatpush1.msra.mxu0 0.0
  %84 = vmatprep.subr.mxu0 0.0
  %85 = vmatpush1.msra.mxu0 0.0
  %86 = vmatprep.subr.mxu0 0.0
  %87 = vmatpush1.msra.mxu0 0.0
  %88 = vmatprep.mubr.f32.mxu0 0.0
  %89 = vmatmul.mubr.f32.gmra.mrb[0].mxu0 %v19
  %v90 = vpop.f32.mrb[0].mxu0
  %v91 = vadd.f32 0.0, %v90
  %v92 = vpop.f32.mrb[0].mxu0
  %93 = vmatprep.mubr.f32.mxu0 0.0
  %94 = vmatmul.mubr.f32.gmra.mrb[0].mxu0 %v22
  %v95 = vpop.f32.mrb[0].mxu0
  %v96 = vadd.f32 0.0, %v95
  %v97 = vpop.f32.mrb[0].mxu0
  %98 = vdwg.mxu0
  %99 = vst [vmem:[%s2] sm:$0xff] %v91
  %100 = vst [vmem:[%s2 + $0x8] sm:$0xff] %v96
  // Predicated region
  $region10: #{fourier_decomp.1} parent=0 // pred_check
    _
  $region11: #{fourier_decomp.1} parent=0 // pred_check_branch
    %102 = sbr.rel (0) target = $region13
  $region12: #{fourier_decomp.1} parent=0 // pred_region
    _
  $region13: #{fourier_decomp.1} parent=0 // pred_fallthru
    _
  // Predicated region
  $region14: #{fourier_decomp.1} parent=0 // pred_check
    _
  $region15: #{fourier_decomp.1} parent=0 // pred_check_branch
    %104 = sbr.rel (0) target = $region17
  $region16: #{fourier_decomp.1} parent=0 // pred_region
    _
  $region17: #{fourier_decomp.1} parent=0 // pred_fallthru
    _

</llo_original>
